<compile_context>
chip_gen: v6e
topology: v6e:2x2x1
jax: 0.10.0
libtpu: 0.0.40
codegen_flags: <defaults>
</compile_context>

<pallas_src>
import jax
import jax.numpy as jnp
from jax.experimental import pallas as pl
from jax.experimental.pallas import tpu as pltpu

_LANE = 128
# Widest lane dims we try (all multiples of 128): wider rows -> fewer, longer
# DMA descriptors and fully unmasked lane-dense stores.
_LANE_CANDIDATES = (4096, 2048, 1024, 512, 256, 128)
# Never shrink a block below ~2 MiB while exposing parallel grid steps; at
# that point the per-step overhead starts to dominate the DMA time.
_MIN_BLOCK_BYTES = 2 * 1024 * 1024


def _device_config():
    """Generation-aware streaming config (block size / grid shaping / VMEM)."""
    kind = ""
    try:
        kind = jax.devices()[0].device_kind.lower()
    except Exception:
        pass
    if "v7" in kind:
        # ~3.2 TB/s HBM: a 2 MiB block is only ~1.3-2.6 us of DMA, so the
        # ~0.35 us step overhead would be 13-27% of each step.  Use 8 MiB
        # blocks and raise the scoped-VMEM limit (2 streams x 2 buffers x
        # 8 MiB = 32 MiB hits the 32 MiB default; physical VMEM is 64 MiB/TC).
        # Two TensorCores -> want an even number (>=4) of "parallel" steps.
        return {"block_bytes": 8 << 20, "min_steps": 4, "even_steps": True,
                "vmem_limit_bytes": 48 << 20}
    if "v6" in kind:
        # 32 MiB default scoped VMEM; 4 x 4 MiB resident is comfortable.
        return {"block_bytes": 4 << 20, "min_steps": 2, "even_steps": False,
                "vmem_limit_bytes": None}
    # v5e / unknown: 16 MiB default scoped VMEM -> keep 4 x 2 MiB resident.
    return {"block_bytes": 2 << 20, "min_steps": 2, "even_steps": False,
            "vmem_limit_bytes": None}


def _sublane_multiple(itemsize):
    # Minimum sublane tile: f32 -> 8, bf16/f16 -> 16, int8/fp8 -> 32.
    return {4: 8, 2: 16, 1: 32}.get(itemsize, 8)


def _star_relu_kernel(scale_ref, bias_ref, x_ref, o_ref):
    # scale/bias are f32 scalars in SMEM.  Compute in f32 and cast once on the
    # way out: the kernel is HBM-bound so the VPU work is free, and the
    # learnable parameters are never rounded to bf16.
    s = scale_ref[0]
    b = bias_ref[0]
    x = x_ref[...].astype(jnp.float32)
    r = jnp.maximum(x, 0.0)
    o_ref[...] = (s * r * r + b).astype(o_ref.dtype)


def _pick_block_rows(rows, row_bytes, sub, cfg):
    """Block row count: big blocks, >= min_steps grid steps, even on v7x."""
    br = max(sub, (cfg["block_bytes"] // row_bytes) // sub * sub)
    if br >= rows:
        br = rows  # full dim is always a legal block dim
    # Expose at least min_steps grid steps (~2 per TensorCore) so both cores /
    # double-buffering get work, but never shrink below ~2 MiB per block.
    while (pl.cdiv(rows, br) < cfg["min_steps"]
           and (br // 2) * row_bytes >= _MIN_BLOCK_BYTES):
        half = max(sub, (br // 2) // sub * sub)
        if half >= br:
            break
        br = half
    # v7x: keep the "parallel" step count even so the two TensorCores get the
    # same number of blocks (no serial tail block on one core).
    if cfg["even_steps"] and br < rows:
        steps = pl.cdiv(rows, br)
        if steps > 1 and steps % 2 == 1:
            b = br - sub
            while b >= sub:
                if pl.cdiv(rows, b) % 2 == 0:
                    br = b
                    break
                b -= sub
    return br


def _run_2d(x2d, scale_f32, bias_f32, br, cfg):
    rows, cols = x2d.shape
    itemsize = jnp.dtype(x2d.dtype).itemsize
    total = rows * cols

    cp_kwargs = {"dimension_semantics": ("parallel",)}
    if cfg["vmem_limit_bytes"] is not None:
        cp_kwargs["vmem_limit_bytes"] = cfg["vmem_limit_bytes"]

    return pl.pallas_call(
        _star_relu_kernel,
        out_shape=jax.ShapeDtypeStruct((rows, cols), x2d.dtype),
        grid_spec=pltpu.PrefetchScalarGridSpec(
            num_scalar_prefetch=0,
            # cdiv grid: a ragged last block is fine for a pure elementwise op
            # (out-of-bounds writes are masked).
            grid=(pl.cdiv(rows, br),),
            in_specs=[
                pl.BlockSpec(memory_space=pltpu.MemorySpace.SMEM),  # scale
                pl.BlockSpec(memory_space=pltpu.MemorySpace.SMEM),  # bias
                pl.BlockSpec((br, cols), lambda i: (i, 0)),         # x block
            ],
            out_specs=pl.BlockSpec((br, cols), lambda i: (i, 0)),
        ),
        compiler_params=pltpu.CompilerParams(**cp_kwargs),
        # Advise XLA's scheduler that this custom call is bandwidth-heavy.
        cost_estimate=pl.CostEstimate(
            flops=4 * total,
            transcendentals=0,
            bytes_accessed=2 * total * itemsize,
        ),
        # Note: input_output_aliases={2: 0} is only free when the input is a
        # donated/intermediate buffer inside a jit; left off for generality.
    )(scale_f32, bias_f32, x2d)


def _star_relu_impl(x, scale, bias):
    """StarReLU: scale * relu(x)**2 + bias, computed in a Pallas TPU kernel.

    x     : arbitrary-shaped float array (e.g. NCHW conv activations)
    scale : shape-(1,) learnable scale (nn.Parameter(torch.ones(1)))
    bias  : shape-(1,) learnable bias
    """
    orig_shape = x.shape
    orig_dtype = x.dtype
    itemsize = jnp.dtype(orig_dtype).itemsize
    n = x.size
    if n == 0:
        return x

    cfg = _device_config()
    sub = _sublane_multiple(itemsize)

    # Keep the learnable scalars in f32 SMEM; do not round them to bf16/fp16.
    scale_f32 = jnp.asarray(scale, jnp.float32).reshape(1)
    bias_f32 = jnp.asarray(bias, jnp.float32).reshape(1)

    if n % _LANE == 0:
        # Fast path: flatten to a lane-dense (rows, lanes) slab with lanes a
        # large multiple of 128 (fully unmasked vector stores).
        lanes = _LANE
        for cand in _LANE_CANDIDATES:
            if n % cand == 0:
                lanes = cand
                break
        rows = n // lanes
        br = _pick_block_rows(rows, lanes * itemsize, sub, cfg)
        out2d = _run_2d(x.reshape(rows, lanes), scale_f32, bias_f32, br, cfg)
        return out2d.reshape(orig_shape)

    # Element count not a multiple of 128: avoid jnp.pad + final slice (each
    # is an extra full HBM pass, ~3x traffic).  Collapse to 2D with the
    # original last dim as the lane dim -- a block whose last dim equals the
    # full array dim is always legal -- and tile the row dim only.
    last = orig_shape[-1] if x.ndim >= 1 else 1
    x2d = x.reshape(-1, last)
    rows, cols = x2d.shape
    row_bytes = max(1, cols * itemsize)
    if row_bytes <= max(cfg["block_bytes"], 4 << 20):
        br = _pick_block_rows(rows, row_bytes, sub, cfg)
        out2d = _run_2d(x2d, scale_f32, bias_f32, br, cfg)
        return out2d.reshape(orig_shape)

    # Last resort (a single row is wider than a block): pad the flat buffer to
    # a multiple of 128 lanes and slice afterwards.  Rare, correct, slower.
    # TODO(synk): tile inside the row instead of padding for this edge case.
    flat = x.reshape(-1)
    pad = (-n) % _LANE
    flat = jnp.pad(flat, (0, pad))
    rows = (n + pad) // _LANE
    br = _pick_block_rows(rows, _LANE * itemsize, sub, cfg)
    out2d = _run_2d(flat.reshape(rows, _LANE), scale_f32, bias_f32, br, cfg)
    return out2d.reshape(-1)[:n].reshape(orig_shape)


# Under jit the pre/post reshapes become metadata-only bitcasts fused around
# the pallas_call instead of separately dispatched ops.
star_relu = jax.jit(_star_relu_impl)


def star_relu_reference(x, scale, bias):
    xf = x.astype(jnp.float32)
    out = (scale.astype(jnp.float32) * jnp.maximum(xf, 0.0) ** 2
           + bias.astype(jnp.float32))
    return out.astype(x.dtype)


if __name__ == "__main__":
    key = jax.random.PRNGKey(0)

    # Deterministic parameter init, mirroring __init__:
    #   scale = scale_value * ones(1) = 1.0, bias = bias_value * ones(1) = 0.0
    scale = jnp.ones((1,), dtype=jnp.float32) * 1.0
    bias = jnp.ones((1,), dtype=jnp.float32) * 0.0

    ok = True

    # 1) Small NCHW f32 input consistent with how StarReLU is used in dfformer.
    k0, k1 = jax.random.split(key)
    x = jax.random.normal(k0, (2, 4, 16, 16), dtype=jnp.float32)
    out = jax.block_until_ready(star_relu(x, scale, bias))
    ref = star_relu_reference(x, scale, bias)
    ok &= out.shape == x.shape and out.dtype == x.dtype
    ok &= bool(jnp.allclose(out, ref, atol=1e-6, rtol=1e-6))

    # 2) Same shape in bf16 (params stay f32 in SMEM; compute in f32).
    xb = x.astype(jnp.bfloat16)
    outb = jax.block_until_ready(star_relu(xb, scale, bias))
    refb = star_relu_reference(xb, scale, bias)
    ok &= outb.shape == xb.shape and outb.dtype == xb.dtype
    ok &= bool(jnp.allclose(outb.astype(jnp.float32), refb.astype(jnp.float32),
                            atol=1e-2, rtol=1e-2))

    # 3) Awkward shape (element count not a multiple of 128) to exercise the
    #    no-padding 2D-collapse path.
    xo = jax.random.normal(k1, (3, 5, 7, 11), dtype=jnp.float32)
    outo = jax.block_until_ready(star_relu(xo, scale, bias))
    refo = star_relu_reference(xo, scale, bias)
    ok &= outo.shape == xo.shape and outo.dtype == xo.dtype
    ok &= bool(jnp.allclose(outo, refo, atol=1e-6, rtol=1e-6))

    assert ok, "mismatch vs reference"
    print("KERNEL_OK")
</pallas_src>

<mosaic_0001>
module attributes {stable_mosaic.version = 11 : i64} {
  func.func @_star_relu_kernel(%arg0: i32, %arg1: memref<1xf32, #tpu.memory_space<smem>>, %arg2: memref<1xf32, #tpu.memory_space<smem>>, %arg3: memref<1x2048xf32, #tpu.memory_space<vmem>>, %arg4: memref<1x2048xf32, #tpu.memory_space<vmem>>) attributes {dimension_semantics = [#tpu.dimension_semantics<parallel>], iteration_bounds = array<i64: 1>, scalar_prefetch = 0 : i64, scratch_operands = 0 : i64, tpu.core_type = #tpu.core_type<tc>, window_params = [{transform_indices = @transform_0, window_bounds = array<i64: 1>}, {transform_indices = @transform_1, window_bounds = array<i64: 1>}, {transform_indices = @transform_2, window_bounds = array<i64: 1, 2048>}, {transform_indices = @transform_3, window_bounds = array<i64: 1, 2048>}]} {
    %c0 = arith.constant 0 : index
    %0 = memref.load %arg1[%c0] : memref<1xf32, #tpu.memory_space<smem>>
    %c0_0 = arith.constant 0 : index
    %1 = memref.load %arg2[%c0_0] : memref<1xf32, #tpu.memory_space<smem>>
    %c0_1 = arith.constant 0 : index
    %c0_2 = arith.constant 0 : index
    %2 = vector.load %arg3[%c0_1, %c0_2] : memref<1x2048xf32, #tpu.memory_space<vmem>>, vector<1x2048xf32>
    %cst = arith.constant 0.000000e+00 : f32
    %3 = vector.broadcast %cst : f32 to vector<1x2048xf32>
    %4 = arith.maximumf %2, %3 : vector<1x2048xf32>
    %5 = vector.broadcast %0 : f32 to vector<1x2048xf32>
    %6 = arith.mulf %5, %4 : vector<1x2048xf32>
    %7 = arith.mulf %6, %4 : vector<1x2048xf32>
    %8 = vector.broadcast %1 : f32 to vector<1x2048xf32>
    %9 = arith.addf %7, %8 : vector<1x2048xf32>
    %c0_3 = arith.constant 0 : index
    %c0_4 = arith.constant 0 : index
    %10 = vector.load %arg4[%c0_3, %c0_4] : memref<1x2048xf32, #tpu.memory_space<vmem>>, vector<1x2048xf32>
    tpu.vector_store %arg4[%c0_3, %c0_4], %9 {strides = array<i32>} : memref<1x2048xf32, #tpu.memory_space<vmem>>, vector<1x2048xf32>,
    return
  }
  func.func @transform_0(%arg0: i32) -> i32 {
    %c0_i32 = arith.constant 0 : i32
    %c0_i32_0 = arith.constant 0 : i32
    return %c0_i32 : i32
  }
  func.func @transform_1(%arg0: i32) -> i32 {
    %c0_i32 = arith.constant 0 : i32
    %c0_i32_0 = arith.constant 0 : i32
    return %c0_i32 : i32
  }
  func.func @transform_2(%arg0: i32) -> (i32, i32) {
    %c0_i32 = arith.constant 0 : i32
    %c0_i32_0 = arith.constant 0 : i32
    return %arg0, %c0_i32 : i32, i32
  }
  func.func @transform_3(%arg0: i32) -> (i32, i32) {
    %c0_i32 = arith.constant 0 : i32
    %c0_i32_0 = arith.constant 0 : i32
    return %arg0, %c0_i32 : i32, i32
  }
}

</mosaic_0001>

<llo_original>
// kernel: _star_relu_impl.1
$region0: #{_star_relu_impl.1}
  #allocation0 [shape = 'u32[]', space=smem, size = 0x4, offset = 0x4, fixed_abs, tag = 'smem constant byte address 0x4 - core index']
  #allocation1 [shape = 'u32[144,128]{1,0:T(1,128)}', space=vmem, size = 0x12000, scoped, tag = 'internal scratch']
  #allocation2 [shape = 'f32[1]{0:T(128)S(6)}', space=smem, size = 0x200, scoped, tag = 'scoped memory for _star_relu_impl.1']
  #allocation3 [shape = 'f32[1]{0:T(128)S(6)}', space=smem, size = 0x200, scoped, tag = 'scoped memory for _star_relu_impl.1']
  %s0 = inlined_call_operand.<no memory space> [shape: f32[1], index: 0, kind: input, shape index: {}]
  %s1 = inlined_call_operand.<no memory space> [shape: f32[1], index: 1, kind: input, shape index: {}]
  %s2 = inlined_call_operand.vmem [shape: f32[1,2048], index: 2, kind: input, shape index: {}]
  %s3 = inlined_call_operand.vmem [shape: f32[1,2048], index: 3, kind: output, shape index: {}]
  %s4 = sld [smem:[#allocation0]]
  $region22: #{_star_relu_impl.1} parent=0
    _
  %s6 = ssub.s32 1, %s4
  %s7 = scalar_select 0, %s6, %s4
  %8 = sst [smem:[#allocation2]] %s0
  %9 = sst [smem:[#allocation3]] %s1
  // Predicated region
  $region2: #{_star_relu_impl.1} parent=0 // pred_check
    _
  $region3: #{_star_relu_impl.1} parent=0 // pred_check_branch
    %11 = sbr.rel (0) target = $region5
  $region4: #{_star_relu_impl.1} parent=0 // pred_region
    _
  $region5: #{_star_relu_impl.1} parent=0 // pred_fallthru
    _
  // Predicated region
  $region6: #{_star_relu_impl.1} parent=0 // pred_check
    _
  $region7: #{_star_relu_impl.1} parent=0 // pred_check_branch
    %13 = sbr.rel (0) target = $region9
  $region8: #{_star_relu_impl.1} parent=0 // pred_region
    _
  $region9: #{_star_relu_impl.1} parent=0 // pred_fallthru
    _
  // Predicated region
  $region10: #{_star_relu_impl.1} parent=0 // pred_check
    _
  $region11: #{_star_relu_impl.1} parent=0 // pred_check_branch
    %15 = sbr.rel (0) target = $region13
  $region12: #{_star_relu_impl.1} parent=0 // pred_region
    _
  $region13: #{_star_relu_impl.1} parent=0 // pred_fallthru
    _
  %s16 = sld [smem:[#allocation2]]
  %s17 = sld [smem:[#allocation3]]
  %v18 = vld [vmem:[%s2] sm:$0xff]
  %v19 = vld [vmem:[%s2 + $0x8] sm:$0xff]
  %v20 = vmax.f32 %v18, 0.0
  %v21 = vmax.f32 %v19, 0.0
  %v22 = vstv %s16
  %v23 = vmul.f32 %v22, %v20
  %v24 = vmul.f32 %v22, %v21
  %v25 = vmul.f32 %v23, %v20
  %v26 = vmul.f32 %v24, %v21
  %v27 = vstv %s17
  %v28 = vadd.f32 %v25, %v27
  %v29 = vadd.f32 %v26, %v27
  %30 = vst [vmem:[%s3] sm:$0xff] %v28
  %31 = vst [vmem:[%s3 + $0x8] sm:$0xff] %v29
  // Predicated region
  $region14: #{_star_relu_impl.1} parent=0 // pred_check
    _
  $region15: #{_star_relu_impl.1} parent=0 // pred_check_branch
    %33 = sbr.rel (0) target = $region17
  $region16: #{_star_relu_impl.1} parent=0 // pred_region
    _
  $region17: #{_star_relu_impl.1} parent=0 // pred_fallthru
    _
  // Predicated region
  $region18: #{_star_relu_impl.1} parent=0 // pred_check
    _
  $region19: #{_star_relu_impl.1} parent=0 // pred_check_branch
    %35 = sbr.rel (0) target = $region21
  $region20: #{_star_relu_impl.1} parent=0 // pred_region
    _
  $region21: #{_star_relu_impl.1} parent=0 // pred_fallthru
    _

</llo_original>
